<compile_context>
chip_gen: v7x
topology: tpu7x:2x2x1
jax: 0.10.0
libtpu: 0.0.40
codegen_flags: <defaults>
</compile_context>

<pallas_src>
import functools
import math

import jax
import jax.numpy as jnp
from jax import lax
from jax.experimental import pallas as pl
from jax.experimental.pallas import tpu as pltpu

GELU_C = math.sqrt(2.0 / math.pi)


def _gelu_tanh(x):
    return 0.5 * x * (1.0 + jnp.tanh(GELU_C * (x + 0.044715 * x * x * x)))


def _device_kind():
    try:
        return jax.devices()[0].device_kind.lower()
    except Exception:
        return ""


def _vmem_limit_bytes():
    kind = _device_kind()
    if "v7" in kind:
        return 48 * 1024 * 1024      # 64 MiB physical per TC on v7x: leave compiler headroom
    if any(t in kind for t in ("v4", "v5", "v6")):
        return 96 * 1024 * 1024      # 128 MiB physical: use more of it
    return 64 * 1024 * 1024


def _cparams(sem=None):
    return pltpu.CompilerParams(dimension_semantics=sem,
                                vmem_limit_bytes=_vmem_limit_bytes())


def _bspec(block_shape, index_map, single_buffered=False):
    # Grid-invariant tiny blocks don't need double-buffering (frees VMEM headroom).
    if single_buffered:
        try:
            return pl.BlockSpec(block_shape, index_map, pipeline_mode=pl.Buffered(1))
        except Exception:
            pass
    return pl.BlockSpec(block_shape, index_map)


def _pick_tile(n, desired, align):
    """Largest divisor of n that is <= desired and a multiple of align (else full n)."""
    desired = min(desired, n)
    if n % align != 0 or desired < align:
        return n
    best = None
    t = align
    while t <= desired:
        if n % t == 0:
            best = t
        t += align
    return best if best is not None else n


# ---------------- Kernel M: modulation = Linear(SiLU(vec)), tiled over 3H columns ----------------
def modulation_kernel(vec_ref, wm_ref, bm_ref, out_ref):
    v = vec_ref[...].astype(jnp.float32)
    s = v * jax.nn.sigmoid(v)                                   # SiLU (tiny; recomputed per tile)
    out_ref[...] = (jnp.dot(s.astype(wm_ref.dtype), wm_ref[...],
                            preferred_element_type=jnp.float32)
                    + bm_ref[...].astype(jnp.float32)).astype(out_ref.dtype)


# -------- Kernel A: pre-LayerNorm (no affine) + modulate (cached) + linear1 (tiled) --------
def prenorm_linear1_kernel(x_ref, shift_ref, scale_ref, w1_ref, b1_ref, out_ref, xm_sc):
    n = pl.program_id(2)

    @pl.when(n == 0)                                            # xm computed once per row tile
    def _():
        x = x_ref[0].astype(jnp.float32)                        # [TL, H]
        mu = jnp.mean(x, axis=-1, keepdims=True)
        var = jnp.mean(jnp.square(x - mu), axis=-1, keepdims=True)
        xn = (x - mu) * lax.rsqrt(var + 1e-6)
        xm = xn * (1.0 + scale_ref[0].astype(jnp.float32)) + shift_ref[0].astype(jnp.float32)
        xm_sc[...] = xm.astype(xm_sc.dtype)

    out = (jnp.dot(xm_sc[...], w1_ref[...], preferred_element_type=jnp.float32)
           + b1_ref[...].astype(jnp.float32))
    out_ref[0] = out.astype(out_ref.dtype)


# ---------- Kernel N: q/k RMSNorm pre-pass (once per token; q weight carries 1/sqrt(D)) ----------
def qk_rmsnorm_kernel(x_ref, w_ref, o_ref, *, n_qk_heads, head_dim):
    for g in range(n_qk_heads):                                 # static, lane-aligned slices
        sl = slice(g * head_dim, (g + 1) * head_dim)
        x = x_ref[:, sl].astype(jnp.float32)
        r = lax.rsqrt(jnp.mean(x * x, axis=-1, keepdims=True) + 1e-6)
        o_ref[:, sl] = (x * r * w_ref[:, sl].astype(jnp.float32)).astype(o_ref.dtype)


# ---------- Kernel B: flash-attention online softmax (pure matmul+softmax inner loop) ----------
def flash_attn_kernel(q_ref, k_ref, v_ref, o_ref, m_sc, l_sc, acc_sc, *, approx_recip):
    ki = pl.program_id(2)

    @pl.when(ki == 0)
    def _():
        m_sc[...] = jnp.full(m_sc.shape, -jnp.inf, jnp.float32)
        l_sc[...] = jnp.zeros(l_sc.shape, jnp.float32)
        acc_sc[...] = jnp.zeros(acc_sc.shape, jnp.float32)

    # q/k are pre-normalized and already in the MXU input dtype (bf16 in production).
    s = lax.dot_general(q_ref[...], k_ref[...], (((1,), (1,)), ((), ())),
                        preferred_element_type=jnp.float32)     # [TQ, TK]
    m_new = jnp.maximum(m_sc[...], jnp.max(s, axis=-1, keepdims=True))
    alpha = jnp.exp(m_sc[...] - m_new)
    p = jnp.exp(s - m_new)
    l_sc[...] = alpha * l_sc[...] + jnp.sum(p, axis=-1, keepdims=True)
    acc_sc[...] = alpha * acc_sc[...] + jnp.dot(p.astype(v_ref.dtype), v_ref[...],
                                                preferred_element_type=jnp.float32)
    m_sc[...] = m_new

    @pl.when(ki == pl.num_programs(2) - 1)
    def _():
        o_ref[...] = (acc_sc[...] * pl.reciprocal(l_sc[...], approx=approx_recip)
                      ).astype(o_ref.dtype)


# ------- Kernel C: K-tiled (attn@w2a + gelu_tanh(mlp)@w2b) + bias + gate + residual -------
def linear2_kernel(attn_ref, lin1_ref, w2a_ref, w2b_ref, b2_ref, gate_ref, x_ref,
                   out_ref, acc_sc, *, n_attn_tiles, n_mlp_tiles, gelu_dtype):
    k = pl.program_id(2)

    @pl.when(k == 0)
    def _():
        acc_sc[...] = jnp.broadcast_to(b2_ref[...].astype(jnp.float32), acc_sc.shape)

    @pl.when(k < n_attn_tiles)
    def _():
        acc_sc[...] += jnp.dot(attn_ref[0], w2a_ref[...],
                               preferred_element_type=jnp.float32)

    @pl.when(k < n_mlp_tiles)
    def _():
        act = _gelu_tanh(lin1_ref[0].astype(gelu_dtype)).astype(w2b_ref.dtype)
        acc_sc[...] += jnp.dot(act, w2b_ref[...], preferred_element_type=jnp.float32)

    @pl.when(k == pl.num_programs(2) - 1)
    def _():
        out_ref[0] = (x_ref[0].astype(jnp.float32)
                      + gate_ref[0].astype(jnp.float32) * acc_sc[...]
                      ).astype(out_ref.dtype)


def single_stream_block(x, vec, params, txt_len=0, freqs_cis=None, *,
                        tl=256, tn=512, tqn=256, tq=256, tkv=256, tl2=256, tkm=512, tmn=512):
    # TODO(synk): rotary embedding (freqs_cis != None) and the sequence-parallel
    # `parallel_attention` branch are not implemented; this is the freqs_cis=None / DISABLE_SP
    # path of the given module, whose standard_attention replacement attends over the flattened
    # B*L sequence with NO per-batch mask (a segment mask would be needed for true varlen).
    del txt_len, freqs_cis
    B, L, H = x.shape
    heads = params["num_heads"]
    D = H // heads
    M = params["mlp_hidden_dim"]
    C1 = 3 * H + M
    S = B * L
    dt = x.dtype

    assert H == heads * D
    assert D % 128 == 0, "head_dim must be a lane multiple"  # TODO(synk): pack heads if D < 128

    tl = _pick_tile(L, tl, 8)
    tn = _pick_tile(C1, tn, 128)
    tqn = _pick_tile(S, tqn, 8)
    tq = _pick_tile(S, tq, 128)
    tkv = _pick_tile(S, tkv, 128)
    tl2 = _pick_tile(L, tl2, 8)
    tkm = _pick_tile(math.gcd(H, M), tkm, 128)
    tmn = _pick_tile(3 * H, tmn, 128)

    is_bf16 = (x.dtype == jnp.bfloat16)
    kind = _device_kind()
    approx_recip = bool(is_bf16)                       # EUP vrcp for bf16 production runs
    no_bf16_eup = any(t in kind for t in ("v2", "v3", "v4", "v5"))
    gelu_dtype = dt if (is_bf16 and not no_bf16_eup) else jnp.float32

    # --- modulation: Linear(SiLU(vec)) -> shift/scale/gate, tiled over the 3H output columns ---
    mod = pl.pallas_call(
        modulation_kernel,
        grid=((3 * H) // tmn,),
        in_specs=[
            _bspec((B, H), lambda n: (0, 0), single_buffered=True),
            pl.BlockSpec((H, tmn), lambda n: (0, n)),
            pl.BlockSpec((1, tmn), lambda n: (0, n)),
        ],
        out_specs=pl.BlockSpec((B, tmn), lambda n: (0, n)),
        out_shape=jax.ShapeDtypeStruct((B, 3 * H), jnp.float32),
        compiler_params=_cparams(("parallel",)),
    )(vec, params["wm"], params["bm"])
    shift, scale, gate = jnp.split(mod, 3, axis=-1)             # each [B, H]
    shift = shift[:, None, :]
    scale = scale[:, None, :]
    gate = gate[:, None, :]

    # --- prenorm + modulate (cached per row tile) + linear1, tiled over rows and output cols ---
    x_lin1 = pl.pallas_call(
        prenorm_linear1_kernel,
        grid=(B, L // tl, C1 // tn),
        in_specs=[
            pl.BlockSpec((1, tl, H), lambda b, i, n: (b, i, 0)),
            pl.BlockSpec((1, 1, H), lambda b, i, n: (b, 0, 0)),
            pl.BlockSpec((1, 1, H), lambda b, i, n: (b, 0, 0)),
            pl.BlockSpec((H, tn), lambda b, i, n: (0, n)),
            pl.BlockSpec((1, tn), lambda b, i, n: (0, n)),
        ],
        out_specs=pl.BlockSpec((1, tl, tn), lambda b, i, n: (b, i, n)),
        out_shape=jax.ShapeDtypeStruct((B, L, C1), dt),
        scratch_shapes=[pltpu.VMEM((tl, H), dt)],               # cached xm row tile
        compiler_params=_cparams(("parallel", "parallel", "arbitrary")),
    )(x, shift, scale, params["w1"], params["b1"])

    # --- q/k RMSNorm pre-pass over the first 2H columns of x_lin1 (O(S), once per token) ---
    lin1_flat = x_lin1.reshape(S, C1)                           # free reshape (leading dims)
    qw_s = (params["qw"].reshape(1, D) * (D ** -0.5)).astype(jnp.float32)
    kw = params["kw"].reshape(1, D).astype(jnp.float32)
    w_rms = jnp.concatenate([jnp.tile(qw_s, (1, heads)), jnp.tile(kw, (1, heads))], axis=-1)

    qk_normed = pl.pallas_call(
        functools.partial(qk_rmsnorm_kernel, n_qk_heads=2 * heads, head_dim=D),
        grid=(S // tqn,),
        in_specs=[
            pl.BlockSpec((tqn, 2 * H), lambda i: (i, 0)),
            _bspec((1, 2 * H), lambda i: (0, 0), single_buffered=True),
        ],
        out_specs=pl.BlockSpec((tqn, 2 * H), lambda i: (i, 0)),
        out_shape=jax.ShapeDtypeStruct((S, 2 * H), dt),
        compiler_params=_cparams(("parallel",)),
    )(lin1_flat, w_rms)

    # --- flash attention: q/k from qk_normed, v straight out of x_lin1 columns (no copies) ---
    attn = pl.pallas_call(
        functools.partial(flash_attn_kernel, approx_recip=approx_recip),
        grid=(heads, S // tq, S // tkv),
        in_specs=[
            pl.BlockSpec((tq, D), lambda h, qi, ki: (qi, h)),
            pl.BlockSpec((tkv, D), lambda h, qi, ki: (ki, heads + h)),
            pl.BlockSpec((tkv, D), lambda h, qi, ki: (ki, 2 * heads + h)),
        ],
        out_specs=pl.BlockSpec((tq, D), lambda h, qi, ki: (qi, h)),
        out_shape=jax.ShapeDtypeStruct((S, H), dt),             # lane-dense [S, H] slab
        scratch_shapes=[pltpu.VMEM((tq, 1), jnp.float32),
                        pltpu.VMEM((tq, 1), jnp.float32),
                        pltpu.VMEM((tq, D), jnp.float32)],
        compiler_params=_cparams(("parallel", "parallel", "arbitrary")),
    )(qk_normed, qk_normed, lin1_flat)
    attn = attn.reshape(B, L, H)                                # free reshape

    # --- linear2: one K loop covers attn@w2a and gelu(mlp)@w2b; gate + residual fused ---
    n_attn_tiles = H // tkm
    n_mlp_tiles = M // tkm
    kt = max(n_attn_tiles, n_mlp_tiles)
    mlp_col0 = (3 * H) // tkm

    def _clamped(limit):
        if limit >= kt:
            return lambda k: k
        return lambda k: jnp.minimum(k, limit - 1)              # index frozen once exhausted
    clamp_a = _clamped(n_attn_tiles)
    clamp_m = _clamped(n_mlp_tiles)

    out = pl.pallas_call(
        functools.partial(linear2_kernel, n_attn_tiles=n_attn_tiles,
                          n_mlp_tiles=n_mlp_tiles, gelu_dtype=gelu_dtype),
        grid=(B, L // tl2, kt),
        in_specs=[
            pl.BlockSpec((1, tl2, tkm), lambda b, i, k: (b, i, clamp_a(k))),
            pl.BlockSpec((1, tl2, tkm), lambda b, i, k: (b, i, mlp_col0 + clamp_m(k))),
            pl.BlockSpec((tkm, H), lambda b, i, k: (clamp_a(k), 0)),
            pl.BlockSpec((tkm, H), lambda b, i, k: (clamp_m(k), 0)),
            _bspec((1, H), lambda b, i, k: (0, 0), single_buffered=True),
            pl.BlockSpec((1, 1, H), lambda b, i, k: (b, 0, 0)),
            pl.BlockSpec((1, tl2, H), lambda b, i, k: (b, i, 0)),
        ],
        out_specs=pl.BlockSpec((1, tl2, H), lambda b, i, k: (b, i, 0)),
        out_shape=jax.ShapeDtypeStruct((B, L, H), dt),
        scratch_shapes=[pltpu.VMEM((tl2, H), jnp.float32)],
        compiler_params=_cparams(("parallel", "parallel", "arbitrary")),
    )(attn, x_lin1, params["w2a"], params["w2b"], params["b2"], gate, x)
    return out


# ---------------------- pure-JAX reference (for verification) ----------------------
def reference_block(x, vec, params):
    B, L, H = x.shape
    heads = params["num_heads"]
    D = H // heads
    sv = vec * jax.nn.sigmoid(vec)
    mod = sv @ params["wm"] + params["bm"][0]
    shift, scale, gate = jnp.split(mod, 3, axis=-1)
    mu = x.mean(-1, keepdims=True)
    var = jnp.mean(jnp.square(x - mu), -1, keepdims=True)
    xn = (x - mu) * jax.lax.rsqrt(var + 1e-6)
    xm = xn * (1.0 + scale[:, None, :]) + shift[:, None, :]
    lin1 = xm @ params["w1"] + params["b1"][0]
    qkv, mlp_x = lin1[..., :3 * H], lin1[..., 3 * H:]
    qkv = qkv.reshape(B, L, 3, heads, D)
    q, k, v = qkv[:, :, 0], qkv[:, :, 1], qkv[:, :, 2]

    def rms(t, w):
        return t * jax.lax.rsqrt(jnp.mean(t * t, -1, keepdims=True) + 1e-6) * w

    q = rms(q, params["qw"][0])
    k = rms(k, params["kw"][0])
    S = B * L
    q = q.reshape(S, heads, D).transpose(1, 0, 2)
    k = k.reshape(S, heads, D).transpose(1, 0, 2)
    v = v.reshape(S, heads, D).transpose(1, 0, 2)
    s = jnp.einsum("hsd,htd->hst", q, k) / math.sqrt(D)
    p = jax.nn.softmax(s, axis=-1)
    a = jnp.einsum("hst,htd->hsd", p, v).transpose(1, 0, 2).reshape(B, L, H)
    act = _gelu_tanh(mlp_x)
    out = a @ params["w2a"] + act @ params["w2b"] + params["b2"][0]
    return x + gate[:, None, :] * out


if __name__ == "__main__":
    # Small but TPU-tile-friendly shapes: head_dim = 128 (lane-dense), rows multiple of 8.
    B, L, H, heads = 2, 128, 256, 2
    mlp_ratio = 2.0
    M = int(H * mlp_ratio)
    D = H // heads
    C1 = 3 * H + M

    key = jax.random.PRNGKey(0)
    keys = jax.random.split(key, 12)

    def lin_init(k, fan_in, shape):
        bound = 1.0 / math.sqrt(fan_in)
        return jax.random.uniform(k, shape, jnp.float32, -bound, bound)

    params = {
        "num_heads": heads,
        "mlp_hidden_dim": M,
        # modulation: Linear(H -> 3H) applied after SiLU (ModulateDiT, factor=3)
        "wm": lin_init(keys[0], H, (H, 3 * H)),
        "bm": lin_init(keys[1], H, (1, 3 * H)),
        # linear1: Linear(H -> 3H + M)
        "w1": lin_init(keys[2], H, (H, C1)),
        "b1": lin_init(keys[3], H, (1, C1)),
        # linear2: Linear(H + M -> H), split into attn-part and mlp-part
        "w2a": lin_init(keys[4], H + M, (H, H)),
        "w2b": lin_init(keys[5], H + M, (M, H)),
        "b2": lin_init(keys[6], H + M, (1, H)),
        # q_norm / k_norm RMSNorm affine weights (head_dim)
        "qw": 1.0 + 0.1 * jax.random.normal(keys[7], (1, D), jnp.float32),
        "kw": 1.0 + 0.1 * jax.random.normal(keys[8], (1, D), jnp.float32),
    }

    x = jax.random.normal(keys[9], (B, L, H), jnp.float32)
    vec = jax.random.normal(keys[10], (B, H), jnp.float32)

    out = single_stream_block(x, vec, params, txt_len=2, freqs_cis=None)
    out = jax.block_until_ready(out)

    ref = reference_block(x, vec, params)
    assert out.shape == (B, L, H)
    err = float(jnp.max(jnp.abs(out - ref)))
    assert jnp.allclose(out, ref, atol=1e-3, rtol=1e-3), f"max abs err {err}"
    print("KERNEL_OK")
</pallas_src>

<mosaic_0001>
module attributes {stable_mosaic.version = 11 : i64} {
  func.func @modulation_kernel(%arg0: i32, %arg1: memref<2x256xf32, #tpu.memory_space<vmem>>, %arg2: memref<256x384xf32, #tpu.memory_space<vmem>>, %arg3: memref<1x384xf32, #tpu.memory_space<vmem>>, %arg4: memref<2x384xf32, #tpu.memory_space<vmem>>) attributes {dimension_semantics = [#tpu.dimension_semantics<parallel>], iteration_bounds = array<i64: 2>, scalar_prefetch = 0 : i64, scratch_operands = 0 : i64, tpu.core_type = #tpu.core_type<tc>, window_params = [{pipeline_mode = #tpu.pipeline_mode<synchronous>, transform_indices = @transform_0, window_bounds = array<i64: 2, 256>}, {transform_indices = @transform_1, window_bounds = array<i64: 256, 384>}, {transform_indices = @transform_2, window_bounds = array<i64: 1, 384>}, {transform_indices = @transform_3, window_bounds = array<i64: 2, 384>}]} {
    %c0 = arith.constant 0 : index
    %c0_0 = arith.constant 0 : index
    %0 = vector.load %arg1[%c0, %c0_0] : memref<2x256xf32, #tpu.memory_space<vmem>>, vector<2x256xf32>
    %1 = arith.negf %0 : vector<2x256xf32>
    %2 = math.exp %1 : vector<2x256xf32>
    %cst = arith.constant 1.000000e+00 : f32
    %3 = vector.broadcast %cst : f32 to vector<2x256xf32>
    %4 = arith.addf %3, %2 : vector<2x256xf32>
    %5 = arith.divf %3, %4 : vector<2x256xf32>
    %6 = arith.mulf %0, %5 : vector<2x256xf32>
    %c0_1 = arith.constant 0 : index
    %c0_2 = arith.constant 0 : index
    %7 = vector.load %arg2[%c0_1, %c0_2] : memref<256x384xf32, #tpu.memory_space<vmem>>, vector<256x384xf32>
    %cst_3 = arith.constant dense<0.000000e+00> : vector<2x384xf32>
    %8 = tpu.matmul %6, %7, %cst_3 {dimension_numbers = #tpu.dot_dimension_numbers<[1], [0], [0], [1], [0, 0, 1, 1], [], []>} : vector<2x256xf32>, vector<256x384xf32>, vector<2x384xf32> -> vector<2x384xf32>
    %c0_4 = arith.constant 0 : index
    %c0_5 = arith.constant 0 : index
    %9 = vector.load %arg3[%c0_4, %c0_5] : memref<1x384xf32, #tpu.memory_space<vmem>>, vector<1x384xf32>
    %10 = vector.broadcast %9 : vector<1x384xf32> to vector<2x384xf32>
    %11 = arith.addf %8, %10 : vector<2x384xf32>
    %c0_6 = arith.constant 0 : index
    %c0_7 = arith.constant 0 : index
    %12 = vector.load %arg4[%c0_6, %c0_7] : memref<2x384xf32, #tpu.memory_space<vmem>>, vector<2x384xf32>
    tpu.vector_store %arg4[%c0_6, %c0_7], %11 {strides = array<i32>} : memref<2x384xf32, #tpu.memory_space<vmem>>, vector<2x384xf32>,
    return
  }
  func.func @transform_0(%arg0: i32) -> (i32, i32) {
    %c0_i32 = arith.constant 0 : i32
    %c0_i32_0 = arith.constant 0 : i32
    %c0_i32_1 = arith.constant 0 : i32
    return %c0_i32, %c0_i32_0 : i32, i32
  }
  func.func @transform_1(%arg0: i32) -> (i32, i32) {
    %c0_i32 = arith.constant 0 : i32
    %c0_i32_0 = arith.constant 0 : i32
    return %c0_i32, %arg0 : i32, i32
  }
  func.func @transform_2(%arg0: i32) -> (i32, i32) {
    %c0_i32 = arith.constant 0 : i32
    %c0_i32_0 = arith.constant 0 : i32
    return %c0_i32, %arg0 : i32, i32
  }
  func.func @transform_3(%arg0: i32) -> (i32, i32) {
    %c0_i32 = arith.constant 0 : i32
    %c0_i32_0 = arith.constant 0 : i32
    return %c0_i32, %arg0 : i32, i32
  }
}

</mosaic_0001>

<llo_original>
// kernel: tpu_custom_call.1
$region0: #{tpu_custom_call.1}
  #allocation0 [shape = 'u32[]', space=smem, size = 0x4, offset = 0x4, fixed_abs, tag = 'smem constant byte address 0x4 - core index']
  #allocation1 [shape = 'u32[144,128]{1,0:T(1,128)}', space=vmem, size = 0x12000, scoped, tag = 'internal scratch']
  %s0 = inlined_call_operand.hbm [shape: f32[2,256], index: 0, kind: input, shape index: {}]
  %s1 = inlined_call_operand.hbm [shape: f32[256,768], index: 1, kind: input, shape index: {}]
  %s2 = inlined_call_operand.hbm [shape: f32[1,768], index: 2, kind: input, shape index: {}]
  %s3 = inlined_call_operand.hbm [shape: f32[2,768], index: 3, kind: output, shape index: {}]
  %s4 = sld [smem:[#allocation0]]
  $region57: #{tpu_custom_call.1} parent=0
    _
  %s6 = ssub.s32 1, %s4
  %s7 = scalar_select 0, %s6, %s4
  $region1: #{tpu_custom_call.1} parent=0
    #allocation2 [shape = 'u8[2048]{0}', space=vmem, size = 0x800, scoped, tag = 'input window, operand 0, single buffered']
    #allocation3 [shape = 's32[2]{0}', space=sflag, size = 0x8, scoped, tag = 'scoped memory for tpu_custom_call.1']
    #allocation4 [shape = 's32[2]{0}', space=sflag, size = 0x8, scoped, tag = 'scoped memory for tpu_custom_call.1']
    #allocation5 [shape = 'u8[786432]{0}', space=vmem, size = 0xc0000, scoped, tag = 'input window, operand 1']
    #allocation6 [shape = 's32[2]{0}', space=sflag, size = 0x8, scoped, tag = 'scoped memory for tpu_custom_call.1']
    #allocation7 [shape = 'u8[3072]{0}', space=vmem, size = 0xc00, scoped, tag = 'input window, operand 2']
    #allocation8 [shape = 'u8[6144]{0}', space=vmem, size = 0x1800, scoped, tag = 'output window, operand 0']
    %8 = vsyncpa [#allocation3], 0
    %9 = vsyncpa [#allocation6], 0
    %s10 = scalar_lea.sflag [#allocation6], 1
    %11 = vsyncpa %s10, 0
    %12 = vsyncpa [#allocation4], 0
    %s13 = scalar_lea.sflag [#allocation4], 1
    %14 = vsyncpa %s13, 0
    loop: start=0, step=1, limit=4
    $region2: #{tpu_custom_call.1} parent=1 // loop_pre_header
      _
    $region3: #{tpu_custom_call.1} parent=1 // loop_header
      %s16 = sphi 0, %s20
      %p17 = scmp.ge.s32.totalorder %s16, 4
      %s24 = sphi 0, %s24
      %s26 = sphi 0, %s24
      %s27 = sphi 0, %s26
      %s41 = sphi 0, %s27
      %s47 = sphi 0, %s49
      %s50 = sphi 0, %s47
      %s51 = sphi 0, %s50
      %s67 = sphi 0, %s51
      %s73 = sphi 0, %s75
      %s76 = sphi 0, %s73
      %s77 = sphi 0, %s76
      %s93 = sphi 0, %s77
      %s99 = sphi 0, %s101
      %s102 = sphi 0, %s99
      %s103 = sphi 0, %s102
      %s119 = sphi 0, %s103
    $region4: #{tpu_custom_call.1} parent=1 // loop_header_branch
      %19 = sbr.rel (%p17) target = $region8
    $region5: #{tpu_custom_call.1} parent=1 // loop_body
      %s21 = ssub.s32 %s16, 1
      %s22 = ssub.s32 %s16, 2
      %s23 = sadd.s32 %s16, 1
      %s25 = sadd.s32 %s24, 1
      %p28 = scmp.eq.s32.totalorder %s16, 1
      %p29 = scmp.ne.s32.totalorder %s24, %s26
      %p30 = scmp.eq.s32.totalorder %s16, 0
      %p31 = por %p29, %p30
      %p32 = scmp.ne.s32.totalorder %s24, %s26
      %p33 = scmp.eq.s32.totalorder %s21, 1
      %p34 = por %p32, %p33
      %p35 = scmp.ne.s32.totalorder %s26, %s27
      %p36 = scmp.eq.s32.totalorder %s21, 0
      %p37 = por %p35, %p36
      %p38 = scmp.ne.s32.totalorder %s26, %s27
      %p39 = scmp.eq.s32.totalorder %s22, 1
      %p40 = por %p38, %p39
      %p42 = scmp.ne.s32.totalorder %s27, %s41
      %p43 = scmp.eq.s32.totalorder %s22, 0
      %p44 = por %p42, %p43
      %s45 = ssub.s32 %s16, %s23
      %p46 = scmp.eq.s32.totalorder %s45, 0
      %s48 = sadd.s32 %s47, 1
      %s49 = scalar_select %p46, %s47, %s48
      %p52 = pneg %p46
      %p53 = scmp.eq.s32.totalorder %s16, 1
      %p54 = por %p52, %p53
      %p55 = scmp.ne.s32.totalorder %s47, %s50
      %p56 = scmp.eq.s32.totalorder %s16, 0
      %p57 = por %p55, %p56
      %p58 = scmp.ne.s32.totalorder %s47, %s50
      %p59 = scmp.eq.s32.totalorder %s21, 1
      %p60 = por %p58, %p59
      %p61 = scmp.ne.s32.totalorder %s50, %s51
      %p62 = scmp.eq.s32.totalorder %s21, 0
      %p63 = por %p61, %p62
      %p64 = scmp.ne.s32.totalorder %s50, %s51
      %p65 = scmp.eq.s32.totalorder %s22, 1
      %p66 = por %p64, %p65
      %p68 = scmp.ne.s32.totalorder %s51, %s67
      %p69 = scmp.eq.s32.totalorder %s22, 0
      %p70 = por %p68, %p69
      %s71 = ssub.s32 %s16, %s23
      %p72 = scmp.eq.s32.totalorder %s71, 0
      %s74 = sadd.s32 %s73, 1
      %s75 = scalar_select %p72, %s73, %s74
      %p78 = pneg %p72
      %p79 = scmp.eq.s32.totalorder %s16, 1
      %p80 = por %p78, %p79
      %p81 = scmp.ne.s32.totalorder %s73, %s76
      %p82 = scmp.eq.s32.totalorder %s16, 0
      %p83 = por %p81, %p82
      %p84 = scmp.ne.s32.totalorder %s73, %s76
      %p85 = scmp.eq.s32.totalorder %s21, 1
      %p86 = por %p84, %p85
      %p87 = scmp.ne.s32.totalorder %s76, %s77
      %p88 = scmp.eq.s32.totalorder %s21, 0
      %p89 = por %p87, %p88
      %p90 = scmp.ne.s32.totalorder %s76, %s77
      %p91 = scmp.eq.s32.totalorder %s22, 1
      %p92 = por %p90, %p91
      %p94 = scmp.ne.s32.totalorder %s77, %s93
      %p95 = scmp.eq.s32.totalorder %s22, 0
      %p96 = por %p94, %p95
      %s97 = ssub.s32 %s16, %s23
      %p98 = scmp.eq.s32.totalorder %s97, 0
      %s100 = sadd.s32 %s99, 1
      %s101 = scalar_select %p98, %s99, %s100
      %p104 = pneg %p98
      %p105 = scmp.eq.s32.totalorder %s16, 1
      %p106 = por %p104, %p105
      %p107 = scmp.ne.s32.totalorder %s99, %s102
      %p108 = scmp.eq.s32.totalorder %s16, 0
      %p109 = por %p107, %p108
      %p110 = scmp.ne.s32.totalorder %s99, %s102
      %p111 = scmp.eq.s32.totalorder %s21, 1
      %p112 = por %p110, %p111
      %p113 = scmp.ne.s32.totalorder %s102, %s103
      %p114 = scmp.eq.s32.totalorder %s21, 0
      %p115 = por %p113, %p114
      %p116 = scmp.ne.s32.totalorder %s102, %s103
      %p117 = scmp.eq.s32.totalorder %s22, 1
      %p118 = por %p116, %p117
      %p120 = scmp.ne.s32.totalorder %s103, %s119
      %p121 = scmp.eq.s32.totalorder %s22, 0
      %p122 = por %p120, %p121
      %p123 = scmp.le.s32.totalorder 1, %s16
      %p124 = scmp.lt.s32.totalorder %s16, 3
      %p125 = pnand %p123, %p124
      %p126 = pneg %p125
      // Predicated region
      $region9: #{tpu_custom_call.1} parent=5 // pred_check
        _
      $region10: #{tpu_custom_call.1} parent=5 // pred_check_branch
        %128 = sbr.rel (%p125) target = $region12
      $region11: #{tpu_custom_call.1} parent=5 // pred_region
        %s129 = ssub.s32 %s16, 1
        // Predicated region
        $region13: #{tpu_custom_call.1} parent=11 // pred_check
          %p130 = pneg %p37
        $region14: #{tpu_custom_call.1} parent=11 // pred_check_branch
          %132 = sbr.rel (%p130) target = $region16
        $region15: #{tpu_custom_call.1} parent=11 // pred_region
          %s134 = ssub.s32 64, 64
          %135 = vsyncadd [#allocation3], %s134
          %s137 = sshll.u32 [#allocation2], 4
          %s138 = int_to_ptr.vmem [resolvable:$true] %s137
          %140 = dma.hbm_to_vmem [thread:$0]  %s0, 64, %s138, [#allocation3]
        $region16: #{tpu_custom_call.1} parent=11 // pred_fallthru
          _
      $region12: #{tpu_custom_call.1} parent=5 // pred_fallthru
        _
      %p141 = scmp.lt.s32.totalorder %s16, 2
      // Predicated region
      $region17: #{tpu_custom_call.1} parent=5 // pred_check
        %p142 = pneg %p141
      $region18: #{tpu_custom_call.1} parent=5 // pred_check_branch
        %144 = sbr.rel (%p142) target = $region20
      $region19: #{tpu_custom_call.1} parent=5 // pred_region
        // Predicated region
        $region21: #{tpu_custom_call.1} parent=19 // pred_check
          %p145 = pneg %p57
        $region22: #{tpu_custom_call.1} parent=19 // pred_check_branch
          %147 = sbr.rel (%p145) target = $region24
        $region23: #{tpu_custom_call.1} parent=19 // pred_region
          %s148 = sand.u32 %s16, 1
          %s149 = scalar_lea.sflag [#allocation6], %s148
          %s150 = sand.u32 %s47, 1
          %s151 = smul.addr %s150, 768
          %s152 = scalar_lea.vmem [#allocation5], %s151
          %s153 = smul.u32 3, %s16
          %s155 = ssub.s32 12288, 12288
          %156 = vsyncadd %s149, %s155
          %s157 = smul.addr %s153, 128
          %s158 = scalar_lea.hbm %s1, %s157
          %s159 = sshll.u32 %s152, 4
          %s160 = int_to_ptr.vmem [resolvable:$true] %s159
          %165 = dma.hbm_to_vmem [thread:$0]  %s158, 12288, %s160, %s149, 768, 384, 24
        $region24: #{tpu_custom_call.1} parent=19 // pred_fallthru
          _
        // Predicated region
        $region25: #{tpu_custom_call.1} parent=19 // pred_check
          %p166 = pneg %p83
        $region26: #{tpu_custom_call.1} parent=19 // pred_check_branch
          %168 = sbr.rel (%p166) target = $region28
        $region27: #{tpu_custom_call.1} parent=19 // pred_region
          %s169 = sand.u32 %s16, 1
          %s170 = scalar_lea.sflag [#allocation6], %s169
          %s171 = sand.u32 %s73, 1
          %s172 = smul.addr %s171, 3
          %s173 = scalar_lea.vmem [#allocation7], %s172
          %s174 = smul.u32 3, %s16
          %s176 = ssub.s32 48, 48
          %177 = vsyncadd %s170, %s176
          %s178 = smul.addr %s174, 16
          %s179 = scalar_lea.hbm %s2, %s178
          %s181 = sshll.u32 %s173, 4
          %s182 = int_to_ptr.vmem [resolvable:$true] %s181
          %184 = dma.hbm_to_vmem [thread:$0]  %s179, 48, %s182, %s170
        $region28: #{tpu_custom_call.1} parent=19 // pred_fallthru
          _
      $region20: #{tpu_custom_call.1} parent=5 // pred_fallthru
        _
      %p185 = scmp.le.s32.totalorder 1, %s16
      %p186 = scmp.lt.s32.totalorder %s16, 3
      %p187 = pnand %p185, %p186
      %p188 = pneg %p187
      // Predicated region
      $region29: #{tpu_custom_call.1} parent=5 // pred_check
        _
      $region30: #{tpu_custom_call.1} parent=5 // pred_check_branch
        %190 = sbr.rel (%p187) target = $region32
      $region31: #{tpu_custom_call.1} parent=5 // pred_region
        %s191 = ssub.s32 %s16, 1
        // Predicated region
        $region33: #{tpu_custom_call.1} parent=31 // pred_check
          %p192 = pneg %p37
        $region34: #{tpu_custom_call.1} parent=31 // pred_check_branch
          %194 = sbr.rel (%p192) target = $region36
        $region35: #{tpu_custom_call.1} parent=31 // pred_region
          %195 = dma.done [#allocation3], 64
        $region36: #{tpu_custom_call.1} parent=31 // pred_fallthru
          _
        %s196 = sand.u32 %s21, 1
        %s197 = scalar_lea.sflag [#allocation6], %s196
        %s198 = sand.u32 %s50, 1
        %s199 = smul.addr %s198, 768
        %s200 = scalar_lea.vmem [#allocation5], %s199
        // Predicated region
        $region37: #{tpu_custom_call.1} parent=31 // pred_check
          %p201 = pneg %p63
        $region38: #{tpu_custom_call.1} parent=31 // pred_check_branch
          %203 = sbr.rel (%p201) target = $region40
        $region39: #{tpu_custom_call.1} parent=31 // pred_region
          %204 = dma.done %s197, 12288
        $region40: #{tpu_custom_call.1} parent=31 // pred_fallthru
          _
        %s205 = sand.u32 %s21, 1
        %s206 = scalar_lea.sflag [#allocation6], %s205
        %s207 = sand.u32 %s76, 1
        %s208 = smul.addr %s207, 3
        %s209 = scalar_lea.vmem [#allocation7], %s208
        // Predicated region
        $region41: #{tpu_custom_call.1} parent=31 // pred_check
          %p210 = pneg %p89
        $region42: #{tpu_custom_call.1} parent=31 // pred_check_branch
          %212 = sbr.rel (%p210) target = $region44
        $region43: #{tpu_custom_call.1} parent=31 // pred_region
          %213 = dma.done %s206, 48
        $region44: #{tpu_custom_call.1} parent=31 // pred_fallthru
          _
        %p214 = pneg %p37
        %p215 = pneg %p34
        %s216 = sand.u32 %s21, 1
        %s217 = scalar_lea.sflag [#allocation6], %s216
        %s218 = sand.u32 %s50, 1
        %s219 = smul.addr %s218, 768
        %s220 = scalar_lea.vmem [#allocation5], %s219
        %p221 = pneg %p63
        %p222 = pneg %p60
        %s223 = sand.u32 %s21, 1
        %s224 = scalar_lea.sflag [#allocation6], %s223
        %s225 = sand.u32 %s76, 1
        %s226 = smul.addr %s225, 3
        %s227 = scalar_lea.vmem [#allocation7], %s226
        %p228 = pneg %p89
        %p229 = pneg %p86
        %p230 = pneg %p115
        %p231 = pneg %p112
        %s232 = sand.u32 %s102, 1
        %s233 = scalar_lea.sflag [#allocation4], %s232
        %s234 = sand.u32 %s102, 1
        %s235 = smul.addr %s234, 6
        %s236 = scalar_lea.vmem [#allocation8], %s235
        %s237 = smul.u32 3, %s21
        %s238 = smul.u32 3, %s21
        %s239 = smul.u32 3, %s21
        %v240 = vld [vmem:[#allocation2] sm:$0xf]
        %v241 = vxor.u32 %v240, 2147483648
        %v242 = vmul.f32 %v241, 1.442695
        %v243 = vpow.pop %v242
        %v244 = vadd.f32 %v243, 1.0
        %v245 = vrcp.pop %v244
        %v246 = vmul.f32 1.0, %v245
        %v247 = vmul.f32 %v240, %v246
        %v248 = vld [vmem:[%s200] sm:$0xff]
        %v249 = vld [vmem:[%s200 + $0x8] sm:$0xff]
        %v250 = vld [vmem:[%s200 + $0x10] sm:$0xff]
        %v251 = vld [vmem:[%s200 + $0x18] sm:$0xff]
        %v252 = vld [vmem:[%s200 + $0x20] sm:$0xff]
        %v253 = vld [vmem:[%s200 + $0x28] sm:$0xff]
        %v254 = vld [vmem:[%s200 + $0x30] sm:$0xff]
        %v255 = vld [vmem:[%s200 + $0x38] sm:$0xff]
        %v256 = vld [vmem:[%s200 + $0x40] sm:$0xff]
        %v257 = vld [vmem:[%s200 + $0x48] sm:$0xff]
        %v258 = vld [vmem:[%s200 + $0x50] sm:$0xff]
        %v259 = vld [vmem:[%s200 + $0x58] sm:$0xff]
        %v260 = vld [vmem:[%s200 + $0x60] sm:$0xff]
        %v261 = vld [vmem:[%s200 + $0x68] sm:$0xff]
        %v262 = vld [vmem:[%s200 + $0x70] sm:$0xff]
        %v263 = vld [vmem:[%s200 + $0x78] sm:$0xff]
        %v264 = vld [vmem:[%s200 + $0x80] sm:$0xff]
        %v265 = vld [vmem:[%s200 + $0x88] sm:$0xff]
        %v266 = vld [vmem:[%s200 + $0x90] sm:$0xff]
        %v267 = vld [vmem:[%s200 + $0x98] sm:$0xff]
        %v268 = vld [vmem:[%s200 + $0xa0] sm:$0xff]
        %v269 = vld [vmem:[%s200 + $0xa8] sm:$0xff]
        %v270 = vld [vmem:[%s200 + $0xb0] sm:$0xff]
        %v271 = vld [vmem:[%s200 + $0xb8] sm:$0xff]
        %v272 = vld [vmem:[%s200 + $0xc0] sm:$0xff]
        %v273 = vld [vmem:[%s200 + $0xc8] sm:$0xff]
        %v274 = vld [vmem:[%s200 + $0xd0] sm:$0xff]
        %v275 = vld [vmem:[%s200 + $0xd8] sm:$0xff]
        %v276 = vld [vmem:[%s200 + $0xe0] sm:$0xff]
        %v277 = vld [vmem:[%s200 + $0xe8] sm:$0xff]
        %v278 = vld [vmem:[%s200 + $0xf0] sm:$0xff]
        %v279 = vld [vmem:[%s200 + $0xf8] sm:$0xff]
        %v280 = vld [vmem:[%s200 + $0x100] sm:$0xff]
        %v281 = vld [vmem:[%s200 + $0x108] sm:$0xff]
        %v282 = vld [vmem:[%s200 + $0x110] sm:$0xff]
        %v283 = vld [vmem:[%s200 + $0x118] sm:$0xff]
        %v284 = vld [vmem:[%s200 + $0x120] sm:$0xff]
        %v285 = vld [vmem:[%s200 + $0x128] sm:$0xff]
        %v286 = vld [vmem:[%s200 + $0x130] sm:$0xff]
        %v287 = vld [vmem:[%s200 + $0x138] sm:$0xff]
        %v288 = vld [vmem:[%s200 + $0x140] sm:$0xff]
        %v289 = vld [vmem:[%s200 + $0x148] sm:$0xff]
        %v290 = vld [vmem:[%s200 + $0x150] sm:$0xff]
        %v291 = vld [vmem:[%s200 + $0x158] sm:$0xff]
        %v292 = vld [vmem:[%s200 + $0x160] sm:$0xff]
        %v293 = vld [vmem:[%s200 + $0x168] sm:$0xff]
        %v294 = vld [vmem:[%s200 + $0x170] sm:$0xff]
        %v295 = vld [vmem:[%s200 + $0x178] sm:$0xff]
        %v296 = vld [vmem:[%s200 + $0x180] sm:$0xff]
        %v297 = vld [vmem:[%s200 + $0x188] sm:$0xff]
        %v298 = vld [vmem:[%s200 + $0x190] sm:$0xff]
        %v299 = vld [vmem:[%s200 + $0x198] sm:$0xff]
        %v300 = vld [vmem:[%s200 + $0x1a0] sm:$0xff]
        %v301 = vld [vmem:[%s200 + $0x1a8] sm:$0xff]
        %v302 = vld [vmem:[%s200 + $0x1b0] sm:$0xff]
        %v303 = vld [vmem:[%s200 + $0x1b8] sm:$0xff]
        %v304 = vld [vmem:[%s200 + $0x1c0] sm:$0xff]
        %v305 = vld [vmem:[%s200 + $0x1c8] sm:$0xff]
        %v306 = vld [vmem:[%s200 + $0x1d0] sm:$0xff]
        %v307 = vld [vmem:[%s200 + $0x1d8] sm:$0xff]
        %v308 = vld [vmem:[%s200 + $0x1e0] sm:$0xff]
        %v309 = vld [vmem:[%s200 + $0x1e8] sm:$0xff]
        %v310 = vld [vmem:[%s200 + $0x1f0] sm:$0xff]
        %v311 = vld [vmem:[%s200 + $0x1f8] sm:$0xff]
        %v312 = vld [vmem:[%s200 + $0x200] sm:$0xff]
        %v313 = vld [vmem:[%s200 + $0x208] sm:$0xff]
        %v314 = vld [vmem:[%s200 + $0x210] sm:$0xff]
        %v315 = vld [vmem:[%s200 + $0x218] sm:$0xff]
        %v316 = vld [vmem:[%s200 + $0x220] sm:$0xff]
        %v317 = vld [vmem:[%s200 + $0x228] sm:$0xff]
        %v318 = vld [vmem:[%s200 + $0x230] sm:$0xff]
        %v319 = vld [vmem:[%s200 + $0x238] sm:$0xff]
        %v320 = vld [vmem:[%s200 + $0x240] sm:$0xff]
        %v321 = vld [vmem:[%s200 + $0x248] sm:$0xff]
        %v322 = vld [vmem:[%s200 + $0x250] sm:$0xff]
        %v323 = vld [vmem:[%s200 + $0x258] sm:$0xff]
        %v324 = vld [vmem:[%s200 + $0x260] sm:$0xff]
        %v325 = vld [vmem:[%s200 + $0x268] sm:$0xff]
        %v326 = vld [vmem:[%s200 + $0x270] sm:$0xff]
        %v327 = vld [vmem:[%s200 + $0x278] sm:$0xff]
        %v328 = vld [vmem:[%s200 + $0x280] sm:$0xff]
        %v329 = vld [vmem:[%s200 + $0x288] sm:$0xff]
        %v330 = vld [vmem:[%s200 + $0x290] sm:$0xff]
        %v331 = vld [vmem:[%s200 + $0x298] sm:$0xff]
        %v332 = vld [vmem:[%s200 + $0x2a0] sm:$0xff]
        %v333 = vld [vmem:[%s200 + $0x2a8] sm:$0xff]
        %v334 = vld [vmem:[%s200 + $0x2b0] sm:$0xff]
        %v335 = vld [vmem:[%s200 + $0x2b8] sm:$0xff]
        %v336 = vld [vmem:[%s200 + $0x2c0] sm:$0xff]
        %v337 = vld [vmem:[%s200 + $0x2c8] sm:$0xff]
        %v338 = vld [vmem:[%s200 + $0x2d0] sm:$0xff]
        %v339 = vld [vmem:[%s200 + $0x2d8] sm:$0xff]
        %v340 = vld [vmem:[%s200 + $0x2e0] sm:$0xff]
        %v341 = vld [vmem:[%s200 + $0x2e8] sm:$0xff]
        %v342 = vld [vmem:[%s200 + $0x2f0] sm:$0xff]
        %v343 = vld [vmem:[%s200 + $0x2f8] sm:$0xff]
        %v344 = vld [vmem:[%s209] sm:$0x7]
        %v346 = vlaneseq
        %v347 = vshrl.u32 %v346, 7
        %v348 = vsub.s32 0, %v347
        %v349 = vrot.slane %v344, %v348
        %v350 = vlaneseq
        %v351 = vshrl.u32 %v350, 7
        %v352 = vsub.s32 1, %v351
        %v353 = vrot.slane %v344, %v352
        %v354 = vlaneseq
        %v355 = vshrl.u32 %v354, 7
        %v356 = vsub.s32 2, %v355
        %v357 = vrot.slane %v344, %v356
        %v363 = vunpack.c.l.s4 1983009808
        %v364 = vunpack.c.0.s8 %v363
        %v365 = vlaneseq
        %v366 = vshrl.u32 %v365, 7
        %v367 = vsub.s32 %v364, %v366
        %v368 = vrot.slane %v247, %v367
        %v369 = vcombine.high %v368, %v368
        %372 = vmatprep.subr.mxu0 %v249
        %373 = vmatpush1.msra.mxu0 %v248
        %374 = vmatprep.subr.mxu0 %v252
        %375 = vmatpush1.msra.mxu0 %v251
        %376 = vmatprep.subr.mxu0 %v255
        %377 = vmatpush1.msra.mxu0 %v254
        %378 = vmatprep.subr.mxu0 %v258
        %379 = vmatpush1.msra.mxu0 %v257
        %380 = vmatprep.subr.mxu0 %v261
        %381 = vmatpush1.msra.mxu0 %v260
        %382 = vmatprep.subr.mxu0 %v264
        %383 = vmatpush1.msra.mxu0 %v263
        %384 = vmatprep.subr.mxu0 %v267
        %385 = vmatpush1.msra.mxu0 %v266
        %386 = vmatprep.subr.mxu0 %v270
        %387 = vmatpush1.msra.mxu0 %v269
        %388 = vmatprep.subr.mxu0 %v273
        %389 = vmatpush1.msra.mxu0 %v272
        %390 = vmatprep.subr.mxu0 %v276
        %391 = vmatpush1.msra.mxu0 %v275
        %392 = vmatprep.subr.mxu0 %v279
        %393 = vmatpush1.msra.mxu0 %v278
        %394 = vmatprep.subr.mxu0 %v282
        %395 = vmatpush1.msra.mxu0 %v281
        %396 = vmatprep.subr.mxu0 %v285
        %397 = vmatpush1.msra.mxu0 %v284
        %398 = vmatprep.subr.mxu0 %v288
        %399 = vmatpush1.msra.mxu0 %v287
        %400 = vmatprep.subr.mxu0 %v291
        %401 = vmatpush1.msra.mxu0 %v290
        %402 = vmatprep.subr.mxu0 %v294
        %403 = vmatpush1.msra.mxu0 %v293
        %404 = vmatprep.subr.mxu0 %v297
        %405 = vmatpush1.msra.mxu0 %v296
        %406 = vmatprep.subr.mxu0 %v300
        %407 = vmatpush1.msra.mxu0 %v299
        %408 = vmatprep.subr.mxu0 %v303
        %409 = vmatpush1.msra.mxu0 %v302
        %410 = vmatprep.subr.mxu0 %v306
        %411 = vmatpush1.msra.mxu0 %v305
        %412 = vmatprep.subr.mxu0 %v309
        %413 = vmatpush1.msra.mxu0 %v308
        %414 = vmatprep.subr.mxu0 %v312
        %415 = vmatpush1.msra.mxu0 %v311
        %416 = vmatprep.subr.mxu0 %v315
        %417 = vmatpush1.msra.mxu0 %v314
        %418 = vmatprep.subr.mxu0 %v318
        %419 = vmatpush1.msra.mxu0 %v317
        %420 = vmatprep.subr.mxu0 %v321
        %421 = vmatpush1.msra.mxu0 %v320
        %422 = vmatprep.subr.mxu0 %v324
        %423 = vmatpush1.msra.mxu0 %v323
        %424 = vmatprep.subr.mxu0 %v327
        %425 = vmatpush1.msra.mxu0 %v326
        %426 = vmatprep.subr.mxu0 %v330
        %427 = vmatpush1.msra.mxu0 %v329
        %428 = vmatprep.subr.mxu0 %v333
        %429 = vmatpush1.msra.mxu0 %v332
        %430 = vmatprep.subr.mxu0 %v336
        %431 = vmatpush1.msra.mxu0 %v335
        %432 = vmatprep.subr.mxu0 %v339
        %433 = vmatpush1.msra.mxu0 %v338
        %434 = vmatprep.subr.mxu0 %v342
        %435 = vmatpush1.msra.mxu0 %v341
        %436 = vmatprep.mubr.f32.mxu0 %v369
        %437 = vmatmul.mubr.f32.gmra.mrb[0].mxu0 %v368
        %v438 = vpop.f32.mrb[0].mxu0
        %v439 = vadd.f32 %v349, %v438
        %v440 = vpop.f32.mrb[0].mxu0
        %v441 = vadd.f32 %v353, %v440
        %442 = vdwg.mxu0
        %443 = vmatprep.subr.mxu0 0.0
        %444 = vmatpush1.msra.mxu0 %v250
        %445 = vmatprep.subr.mxu0 0.0
        %446 = vmatpush1.msra.mxu0 %v253
        %447 = vmatprep.subr.mxu0 0.0
        %448 = vmatpush1.msra.mxu0 %v256
        %449 = vmatprep.subr.mxu0 0.0
        %450 = vmatpush1.msra.mxu0 %v259
        %451 = vmatprep.subr.mxu0 0.0
        %452 = vmatpush1.msra.mxu0 %v262
        %453 = vmatprep.subr.mxu0 0.0
        %454 = vmatpush1.msra.mxu0 %v265
        %455 = vmatprep.subr.mxu0 0.0
        %456 = vmatpush1.msra.mxu0 %v268
        %457 = vmatprep.subr.mxu0 0.0
        %458 = vmatpush1.msra.mxu0 %v271
        %459 = vmatprep.subr.mxu0 0.0
        %460 = vmatpush1.msra.mxu0 %v274
        %461 = vmatprep.subr.mxu0 0.0
        %462 = vmatpush1.msra.mxu0 %v277
        %463 = vmatprep.subr.mxu0 0.0
        %464 = vmatpush1.msra.mxu0 %v280
        %465 = vmatprep.subr.mxu0 0.0
        %466 = vmatpush1.msra.mxu0 %v283
        %467 = vmatprep.subr.mxu0 0.0
        %468 = vmatpush1.msra.mxu0 %v286
        %469 = vmatprep.subr.mxu0 0.0
        %470 = vmatpush1.msra.mxu0 %v289
        %471 = vmatprep.subr.mxu0 0.0
        %472 = vmatpush1.msra.mxu0 %v292
        %473 = vmatprep.subr.mxu0 0.0
        %474 = vmatpush1.msra.mxu0 %v295
        %475 = vmatprep.subr.mxu0 0.0
        %476 = vmatpush1.msra.mxu0 %v298
        %477 = vmatprep.subr.mxu0 0.0
        %478 = vmatpush1.msra.mxu0 %v301
        %479 = vmatprep.subr.mxu0 0.0
        %480 = vmatpush1.msra.mxu0 %v304
        %481 = vmatprep.subr.mxu0 0.0
        %482 = vmatpush1.msra.mxu0 %v307
        %483 = vmatprep.subr.mxu0 0.0
        %484 = vmatpush1.msra.mxu0 %v310
        %485 = vmatprep.subr.mxu0 0.0
        %486 = vmatpush1.msra.mxu0 %v313
        %487 = vmatprep.subr.mxu0 0.0
        %488 = vmatpush1.msra.mxu0 %v316
        %489 = vmatprep.subr.mxu0 0.0
        %490 = vmatpush1.msra.mxu0 %v319
        %491 = vmatprep.subr.mxu0 0.0
        %492 = vmatpush1.msra.mxu0 %v322
        %493 = vmatprep.subr.mxu0 0.0
        %494 = vmatpush1.msra.mxu0 %v325
        %495 = vmatprep.subr.mxu0 0.0
        %496 = vmatpush1.msra.mxu0 %v328
        %497 = vmatprep.subr.mxu0 0.0
        %498 = vmatpush1.msra.mxu0 %v331
        %499 = vmatprep.subr.mxu0 0.0
        %500 = vmatpush1.msra.mxu0 %v334
        %501 = vmatprep.subr.mxu0 0.0
        %502 = vmatpush1.msra.mxu0 %v337
        %503 = vmatprep.subr.mxu0 0.0
        %504 = vmatpush1.msra.mxu0 %v340
        %505 = vmatprep.subr.mxu0 0.0
        %506 = vmatpush1.msra.mxu0 %v343
        %507 = vmatprep.mubr.f32.mxu0 %v369
        %508 = vmatmul.mubr.f32.gmra.mrb[0].mxu0 %v368
        %v509 = vpop.f32.mrb[0].mxu0
        %v510 = vadd.f32 %v357, %v509
        %v511 = vpop.f32.mrb[0].mxu0
        %512 = vdwg.mxu0
        %v516 = vcombine.low %v439, %v441
        %v518 = vunpack.c.l.s4 1983009808
        %v519 = vunpack.c.0.s8 %v518
        %v520 = vlaneseq
        %v521 = vshrl.u32 %v520, 7
        %v522 = vsub.s32 %v519, %v521
        %v523 = vrot.slane %v516, %v522
        %v525 = vunpack.c.l.s4 1983009808
        %v526 = vunpack.c.0.s8 %v525
        %v527 = vlaneseq
        %v528 = vshrl.u32 %v527, 7
        %v529 = vsub.s32 %v526, %v528
        %v530 = vrot.slane %v510, %v529
        %v531 = vcombine.low %v523, %v530
        %533 = vst [vmem:[%s236] sm:$0x3f] %v531
        %s534 = sand.u32 %s102, 1
        %s535 = scalar_lea.sflag [#allocation4], %s534
        %s536 = sand.u32 %s102, 1
        %s537 = smul.addr %s536, 6
        %s538 = scalar_lea.vmem [#allocation8], %s537
        // Predicated region
        $region45: #{tpu_custom_call.1} parent=31 // pred_check
          %p539 = pneg %p112
        $region46: #{tpu_custom_call.1} parent=31 // pred_check_branch
          %541 = sbr.rel (%p539) target = $region48
        $region47: #{tpu_custom_call.1} parent=31 // pred_region
          %s542 = smul.u32 3, %s21
          %s544 = ssub.s32 96, 96
          %545 = vsyncadd %s535, %s544
          %s546 = smul.addr %s542, 32
          %s547 = scalar_lea.hbm %s3, %s546
          %s549 = sshll.u32 %s538, 4
          %s550 = int_to_ptr.vmem [resolvable:$true] %s549
          %552 = dma.vmem_to_hbm [thread:$0]  %s550, 96, %s547, %s535
        $region48: #{tpu_custom_call.1} parent=31 // pred_fallthru
          _
      $region32: #{tpu_custom_call.1} parent=5 // pred_fallthru
        _
      %p553 = scmp.le.s32.totalorder 2, %s16
      // Predicated region
      $region49: #{tpu_custom_call.1} parent=5 // pred_check
        %p554 = pneg %p553
      $region50: #{tpu_custom_call.1} parent=5 // pred_check_branch
        %556 = sbr.rel (%p554) target = $region52
      $region51: #{tpu_custom_call.1} parent=5 // pred_region
        %s557 = ssub.s32 %s16, 2
        // Predicated region
        $region53: #{tpu_custom_call.1} parent=51 // pred_check
          %p558 = pneg %p118
        $region54: #{tpu_custom_call.1} parent=51 // pred_check_branch
          %560 = sbr.rel (%p558) target = $region56
        $region55: #{tpu_custom_call.1} parent=51 // pred_region
          %s561 = sand.u32 %s103, 1
          %s562 = scalar_lea.sflag [#allocation4], %s561
          %s563 = sand.u32 %s103, 1
          %s564 = smul.addr %s563, 6
          %s565 = scalar_lea.vmem [#allocation8], %s564
          %566 = dma.done %s562, 96
        $region56: #{tpu_custom_call.1} parent=51 // pred_fallthru
          _
      $region52: #{tpu_custom_call.1} parent=5 // pred_fallthru
        _
    $region6: #{tpu_custom_call.1} parent=1 // loop_footer
      %s20 = sadd.s32 1, %s16
    $region7: #{tpu_custom_call.1} parent=1 // loop_footer_branch
      %15 = sbr.rel target = $region3
    $region8: #{tpu_custom_call.1} parent=1 // loop_exit
      _
    %567 = vsyncpa [#allocation3], 1
    %s568 = scalar_lea.sflag [#allocation3], 1
    %569 = vsyncpa %s568, 1
    %570 = vsyncpa [#allocation6], 1
    %s571 = scalar_lea.sflag [#allocation6], 1
    %572 = vsyncpa %s571, 1
    %573 = vsyncpa [#allocation4], 1
    %s574 = scalar_lea.sflag [#allocation4], 1
    %575 = vsyncpa %s574, 1

</llo_original>
